<compile_context>
chip_gen: v7x
topology: tpu7x:2x2x1
jax: 0.10.0
libtpu: 0.0.40
codegen_flags: <defaults>
</compile_context>

<pallas_src>
import functools

import jax
import jax.numpy as jnp
from jax.experimental import pallas as pl
from jax.experimental.pallas import tpu as pltpu


# ----------------------------------------------------------------------------
# Fused kernel.
#   phase p==0 : acc += (z - mean)_tile @ Vh^T_tile   (reduction over F tiles)
#                last step: scaled = (acc * S/(S+t^2)).astype(bf16)
#   phase p==1 : out_tile = scaled @ U^T_tile + mean_tile
# ----------------------------------------------------------------------------
def _fused_kernel(z_ref, mean_ref, vht_ref, ut_ref, t_ref, s_ref,
                  o_ref, acc_ref, scaled_ref):
    p = pl.program_id(0)
    j = pl.program_id(1)
    nt = pl.num_programs(1)

    @pl.when(jnp.logical_and(p == 0, j == 0))
    def _init():
        acc_ref[...] = jnp.zeros_like(acc_ref)

    @pl.when(p == 0)
    def _reduce():
        diff = (z_ref[...] - mean_ref[...]).astype(jnp.bfloat16)
        acc_ref[...] += jnp.dot(diff, vht_ref[...],
                                preferred_element_type=jnp.float32)

        @pl.when(j == nt - 1)
        def _scale():
            t = t_ref[...]               # [Np, 1]
            S = s_ref[...]               # [1, D]
            s_aug = S / (S + t * t)      # [Np, D], computed once per call
            scaled_ref[...] = (acc_ref[...] * s_aug).astype(jnp.bfloat16)

    @pl.when(p == 1)
    def _expand():
        out = jnp.dot(scaled_ref[...], ut_ref[...],
                      preferred_element_type=jnp.float32) + mean_ref[...]
        o_ref[...] = out.astype(o_ref.dtype)


# ----------------------------------------------------------------------------
# Per-generation VMEM budget and tile sizing.
# ----------------------------------------------------------------------------
def _vmem_budget_bytes():
    """Scoped-VMEM budget: 3/4 of physical capacity (128 MiB v5e/v6e, 64 MiB v7x)."""
    cap = 64 * 1024 * 1024  # conservative default (v7x)
    try:
        info = pltpu.get_tpu_info()
        cap = int(getattr(info, "vmem_capacity_bytes", cap))
    except Exception:
        pass
    return (cap * 3) // 4


def _fused_vmem_bytes(tf, D, Np):
    """Double-buffered streamed tiles plus resident scratch."""
    per_step = (tf * D * 2      # Vh^T tile (bf16)
                + D * tf * 2    # U^T tile  (bf16)
                + Np * tf * 4   # z tile    (f32)
                + tf * 4        # mean tile (f32)
                + Np * tf * 4)  # out tile  (f32)
    resident = Np * D * 4 + Np * D * 2 + Np * 4 + D * 4
    return 2 * per_step + resident


def _pick_tile(F, D, Np, vmem_budget):
    """Largest lane-dense (multiple of 128) tile dividing F that (a) fits the
    VMEM budget double-buffered, (b) keeps n_tiles >= 2 (cap at F//2), and
    (c) is capped at 4096 so per-step bytes comfortably amortize step overhead."""
    if F % 128 != 0 or F < 256:
        return F  # fall back to a single full-extent tile
    best = 128
    max_tf = min(F // 2, 4096)
    tf = 128
    while tf <= max_tf:
        if F % tf == 0 and _fused_vmem_bytes(tf, D, Np) <= vmem_budget:
            best = tf
        tf += 128
    return best


# ----------------------------------------------------------------------------
# One-time parameter preparation (hoisted out of the per-call path).
# ----------------------------------------------------------------------------
def prepare_gaussian_params(mean, U, S, Vh):
    """mean: [F], U: [F, D], S: [D], Vh: [D, F] -> kernel-layout params."""
    F = mean.shape[-1]
    D = S.shape[-1]
    mean2 = mean.reshape(1, F).astype(jnp.float32)
    s2 = S.reshape(1, D).astype(jnp.float32)
    vht_bf = jnp.transpose(Vh.reshape(D, F)).astype(jnp.bfloat16)   # [F, D]
    ut_bf = jnp.transpose(U.reshape(F, D)).astype(jnp.bfloat16)     # [D, F]
    return mean2, s2, vht_bf, ut_bf


# ----------------------------------------------------------------------------
# Forward wrapper.
# ----------------------------------------------------------------------------
@functools.partial(jax.jit, static_argnames=())
def gaussian_denoise(z, t, mean2, s2, vht_bf, ut_bf):
    """z: [N, C, H, W], t: [N]; params from prepare_gaussian_params."""
    N, C, H, W = z.shape
    F = C * H * W
    D = s2.shape[-1]

    budget = _vmem_budget_bytes()
    Np = max(8, ((N + 7) // 8) * 8)
    tf = _pick_tile(F, D, Np, budget)
    nt = F // tf

    z_flat = z.reshape(N, F).astype(jnp.float32)
    t_col = t.reshape(N, 1).astype(jnp.float32)
    if Np != N:
        # Pad batch to a full sublane group. Skipped entirely when already
        # aligned to avoid an extra HBM roundtrip of the full activation.
        z_flat = jnp.pad(z_flat, ((0, Np - N), (0, 0)))
        t_col = jnp.pad(t_col, ((0, Np - N), (0, 0)), constant_values=1.0)

    footprint = _fused_vmem_bytes(tf, D, Np)
    vmem_cap = int(min(budget, max(2 * footprint, 16 * 1024 * 1024)))

    cost = pl.CostEstimate(
        flops=4 * Np * F * D + 6 * Np * D + Np * F,
        transcendentals=0,
        bytes_accessed=(2 * F * D * 2      # both bf16 weight streams
                        + Np * F * 4       # z read
                        + Np * F * 4       # out write
                        + 2 * F * 4        # mean (both phases)
                        + Np * 4 + D * 4),
    )

    out_pad = pl.pallas_call(
        _fused_kernel,
        out_shape=jax.ShapeDtypeStruct((Np, F), jnp.float32),
        grid=(2, nt),
        in_specs=[
            # z: streamed over j in phase 0; parked on its last tile in phase 1
            # (same block index -> no wasted refetch).
            pl.BlockSpec((Np, tf), lambda p, j: (0, j * (1 - p) + (nt - 1) * p)),
            # mean: tile j in both phases (subtract, then add).
            pl.BlockSpec((1, tf), lambda p, j: (0, j)),
            # Vh^T: streamed in phase 0; parked in phase 1.
            pl.BlockSpec((tf, D), lambda p, j: (j * (1 - p) + (nt - 1) * p, 0)),
            # U^T: parked on tile 0 during phase 0 (prefetch overlaps the
            # reduction tail); streamed over j in phase 1.
            pl.BlockSpec((D, tf), lambda p, j: (0, j * p)),
            pl.BlockSpec((Np, 1), lambda p, j: (0, 0)),   # t
            pl.BlockSpec((1, D), lambda p, j: (0, 0)),    # S
        ],
        # Output block index is 0 during all of phase 0 (never written back
        # until phase 1 fills it), then walks j during phase 1 -> lane-dense,
        # monotonic stores.
        out_specs=pl.BlockSpec((Np, tf), lambda p, j: (0, j * p)),
        scratch_shapes=[pltpu.VMEM((Np, D), jnp.float32),    # fp32 accumulator
                        pltpu.VMEM((Np, D), jnp.bfloat16)],  # scaled (bf16, cast once)
        compiler_params=pltpu.CompilerParams(
            dimension_semantics=("arbitrary", "arbitrary"),
            vmem_limit_bytes=vmem_cap,
        ),
        cost_estimate=cost,
    )(z_flat, mean2, vht_bf, ut_bf, t_col, s2)

    return out_pad[:N].reshape(N, C, H, W)


# ----------------------------------------------------------------------------
# References.
# ----------------------------------------------------------------------------
def gaussian_denoise_ref_f32(z, t, mean, U, S, Vh):
    """Pure fp32 reference matching GaussianDenoiser.forward semantics."""
    N = z.shape[0]
    diff = z.reshape(N, -1).astype(jnp.float32) - mean[None, :]
    s_aug = S[None, :] / (S[None, :] + t.reshape(N, 1) ** 2)
    v = diff @ Vh.T
    out = mean[None, :] + (v * s_aug) @ U.T
    return out.reshape(z.shape)


def gaussian_denoise_ref_bf16(z, t, mean, U, S, Vh):
    """Reference mirroring the kernel's bf16-weight / fp32-accumulate dtype path."""
    N = z.shape[0]
    diff = (z.reshape(N, -1).astype(jnp.float32) - mean[None, :]).astype(jnp.bfloat16)
    vht_bf = Vh.T.astype(jnp.bfloat16)
    ut_bf = U.T.astype(jnp.bfloat16)
    v = jnp.dot(diff, vht_bf, preferred_element_type=jnp.float32)
    s_aug = S[None, :] / (S[None, :] + t.reshape(N, 1) ** 2)
    scaled = (v * s_aug).astype(jnp.bfloat16)
    out = mean[None, :] + jnp.dot(scaled, ut_bf, preferred_element_type=jnp.float32)
    return out.reshape(z.shape)


if __name__ == "__main__":
    # Small shapes consistent with the [N, C, H, W] / [N] BaseDenoiser interface.
    N, C, H, W = 2, 4, 16, 16
    F = C * H * W            # 1024 (multiple of 128 -> lane-dense tiles, 2 F-tiles)
    D = 128                  # rank of the Gaussian model

    key = jax.random.PRNGKey(0)
    kz, kt, km, ku, ks, kv = jax.random.split(key, 6)

    z = jax.random.normal(kz, (N, C, H, W), dtype=jnp.float32)
    t = jax.random.uniform(kt, (N,), dtype=jnp.float32, minval=0.1, maxval=2.0)

    # TODO(synk): in the original module U, S, Vh come from torch.linalg.svd of the
    # dataset covariance (and EmpiricalDenoiser/PSPC*/NetworkDenoiser need a dataset,
    # per-pixel masks, or a pickled net); here they are deterministically synthesized.
    mean = jax.random.normal(km, (F,), dtype=jnp.float32) * 0.1
    U = jax.random.normal(ku, (F, D), dtype=jnp.float32) / jnp.sqrt(F)
    S = jnp.abs(jax.random.normal(ks, (D,), dtype=jnp.float32)) + 0.1
    Vh = jax.random.normal(kv, (D, F), dtype=jnp.float32) / jnp.sqrt(F)

    # One-time parameter prep (pre-transpose + bf16 cast) -- not per call.
    mean2, s2, vht_bf, ut_bf = prepare_gaussian_params(mean, U, S, Vh)

    out = gaussian_denoise(z, t, mean2, s2, vht_bf, ut_bf)
    out = jax.block_until_ready(out)

    assert out.shape == z.shape and out.dtype == jnp.float32

    # Tight check against a dtype-matched (bf16-weight, fp32-accum) reference.
    ref_bf16 = gaussian_denoise_ref_bf16(z, t, mean, U, S, Vh)
    assert jnp.allclose(out, ref_bf16, atol=2e-3, rtol=2e-3), \
        "mismatch vs bf16-matched reference"

    # Looser check against the full fp32 GaussianDenoiser reference (bf16 weights
    # introduce ~1e-2-level relative error; tolerance would need re-derivation at
    # production-scale F, as flagged in the perf review).
    ref_f32 = gaussian_denoise_ref_f32(z, t, mean, U, S, Vh)
    assert jnp.allclose(out, ref_f32, atol=5e-2, rtol=5e-2), \
        "mismatch vs fp32 reference"

    print("KERNEL_OK")
</pallas_src>

<mosaic_0001>
module attributes {stable_mosaic.version = 11 : i64} {
  func.func @_fused_kernel(%arg0: i32, %arg1: i32, %arg2: memref<8x512xf32, #tpu.memory_space<vmem>>, %arg3: memref<1x512xf32, #tpu.memory_space<vmem>>, %arg4: memref<512x128xbf16, #tpu.memory_space<vmem>>, %arg5: memref<128x512xbf16, #tpu.memory_space<vmem>>, %arg6: memref<8x1xf32, #tpu.memory_space<vmem>>, %arg7: memref<1x128xf32, #tpu.memory_space<vmem>>, %arg8: memref<8x512xf32, #tpu.memory_space<vmem>>, %arg9: memref<8x128xf32, #tpu.memory_space<vmem>>, %arg10: memref<8x128xbf16, #tpu.memory_space<vmem>>) attributes {dimension_semantics = [#tpu.dimension_semantics<arbitrary>, #tpu.dimension_semantics<arbitrary>], iteration_bounds = array<i64: 2, 2>, scalar_prefetch = 0 : i64, scratch_operands = 2 : i64, tpu.core_type = #tpu.core_type<tc>, window_params = [{transform_indices = @transform_0, window_bounds = array<i64: 8, 512>}, {transform_indices = @transform_1, window_bounds = array<i64: 1, 512>}, {transform_indices = @transform_2, window_bounds = array<i64: 512, 128>}, {transform_indices = @transform_3, window_bounds = array<i64: 128, 512>}, {pipeline_mode = #tpu.pipeline_mode<synchronous>, transform_indices = @transform_4, window_bounds = array<i64: 8, 1>}, {pipeline_mode = #tpu.pipeline_mode<synchronous>, transform_indices = @transform_5, window_bounds = array<i64: 1, 128>}, {transform_indices = @transform_6, window_bounds = array<i64: 8, 512>}]} {
    %c0_i32 = arith.constant 0 : i32
    %0 = arith.cmpi eq, %arg0, %c0_i32 : i32
    %c0_i32_0 = arith.constant 0 : i32
    %1 = arith.cmpi eq, %arg1, %c0_i32_0 : i32
    %2 = arith.andi %0, %1 : i1
    %3 = arith.extui %2 : i1 to i32
    %c0_i32_1 = arith.constant 0 : i32
    %4 = arith.cmpi ne, %3, %c0_i32_1 : i32
    scf.if %4 {
      %cst = arith.constant 0.000000e+00 : f32
      %11 = vector.broadcast %cst : f32 to vector<8x128xf32>
      %c0 = arith.constant 0 : index
      %c0_5 = arith.constant 0 : index
      %12 = vector.load %arg9[%c0, %c0_5] : memref<8x128xf32, #tpu.memory_space<vmem>>, vector<8x128xf32>
      tpu.vector_store %arg9[%c0, %c0_5], %11 {strides = array<i32>} : memref<8x128xf32, #tpu.memory_space<vmem>>, vector<8x128xf32>,
    } else {
    }
    %c0_i32_2 = arith.constant 0 : i32
    %5 = arith.cmpi eq, %arg0, %c0_i32_2 : i32
    %6 = arith.extui %5 : i1 to i32
    %c0_i32_3 = arith.constant 0 : i32
    %7 = arith.cmpi ne, %6, %c0_i32_3 : i32
    scf.if %7 {
      %c0 = arith.constant 0 : index
      %c0_5 = arith.constant 0 : index
      %11 = vector.load %arg2[%c0, %c0_5] : memref<8x512xf32, #tpu.memory_space<vmem>>, vector<8x512xf32>
      %c0_6 = arith.constant 0 : index
      %c0_7 = arith.constant 0 : index
      %12 = vector.load %arg3[%c0_6, %c0_7] : memref<1x512xf32, #tpu.memory_space<vmem>>, vector<1x512xf32>
      %13 = vector.broadcast %12 : vector<1x512xf32> to vector<8x512xf32>
      %14 = arith.subf %11, %13 : vector<8x512xf32>
      %15 = arith.truncf %14 : vector<8x512xf32> to vector<8x512xbf16>
      %c0_8 = arith.constant 0 : index
      %c0_9 = arith.constant 0 : index
      %16 = vector.load %arg9[%c0_8, %c0_9] : memref<8x128xf32, #tpu.memory_space<vmem>>, vector<8x128xf32>
      %c0_10 = arith.constant 0 : index
      %c0_11 = arith.constant 0 : index
      %17 = vector.load %arg4[%c0_10, %c0_11] : memref<512x128xbf16, #tpu.memory_space<vmem>>, vector<512x128xbf16>
      %cst = arith.constant dense<0.000000e+00> : vector<8x128xf32>
      %18 = tpu.matmul %15, %17, %cst {dimension_numbers = #tpu.dot_dimension_numbers<[1], [0], [0], [1], [0, 0, 1, 1], [], []>} : vector<8x512xbf16>, vector<512x128xbf16>, vector<8x128xf32> -> vector<8x128xf32>
      %19 = arith.addf %16, %18 : vector<8x128xf32>
      %c0_12 = arith.constant 0 : index
      %c0_13 = arith.constant 0 : index
      %20 = vector.load %arg9[%c0_12, %c0_13] : memref<8x128xf32, #tpu.memory_space<vmem>>, vector<8x128xf32>
      tpu.vector_store %arg9[%c0_12, %c0_13], %19 {strides = array<i32>} : memref<8x128xf32, #tpu.memory_space<vmem>>, vector<8x128xf32>,
      %c1_i32_14 = arith.constant 1 : i32
      %21 = arith.cmpi eq, %arg1, %c1_i32_14 : i32
      %22 = arith.extui %21 : i1 to i32
      %c0_i32_15 = arith.constant 0 : i32
      %23 = arith.cmpi ne, %22, %c0_i32_15 : i32
      scf.if %23 {
        %c0_16 = arith.constant 0 : index
        %c0_17 = arith.constant 0 : index
        %24 = vector.load %arg6[%c0_16, %c0_17] : memref<8x1xf32, #tpu.memory_space<vmem>>, vector<8x1xf32>
        %c0_18 = arith.constant 0 : index
        %c0_19 = arith.constant 0 : index
        %25 = vector.load %arg7[%c0_18, %c0_19] : memref<1x128xf32, #tpu.memory_space<vmem>>, vector<1x128xf32>
        %26 = arith.mulf %24, %24 : vector<8x1xf32>
        %27 = vector.broadcast %25 : vector<1x128xf32> to vector<8x128xf32>
        %28 = vector.broadcast %26 : vector<8x1xf32> to vector<8x128xf32>
        %29 = arith.addf %27, %28 : vector<8x128xf32>
        %30 = vector.broadcast %25 : vector<1x128xf32> to vector<8x128xf32>
        %31 = arith.divf %30, %29 : vector<8x128xf32>
        %c0_20 = arith.constant 0 : index
        %c0_21 = arith.constant 0 : index
        %32 = vector.load %arg9[%c0_20, %c0_21] : memref<8x128xf32, #tpu.memory_space<vmem>>, vector<8x128xf32>
        %33 = arith.mulf %32, %31 : vector<8x128xf32>
        %34 = arith.truncf %33 : vector<8x128xf32> to vector<8x128xbf16>
        %c0_22 = arith.constant 0 : index
        %c0_23 = arith.constant 0 : index
        %35 = vector.load %arg10[%c0_22, %c0_23] : memref<8x128xbf16, #tpu.memory_space<vmem>>, vector<8x128xbf16>
        tpu.vector_store %arg10[%c0_22, %c0_23], %34 {strides = array<i32>} : memref<8x128xbf16, #tpu.memory_space<vmem>>, vector<8x128xbf16>,
      } else {
      }
    } else {
    }
    %c1_i32 = arith.constant 1 : i32
    %8 = arith.cmpi eq, %arg0, %c1_i32 : i32
    %9 = arith.extui %8 : i1 to i32
    %c0_i32_4 = arith.constant 0 : i32
    %10 = arith.cmpi ne, %9, %c0_i32_4 : i32
    scf.if %10 {
      %c0 = arith.constant 0 : index
      %c0_5 = arith.constant 0 : index
      %11 = vector.load %arg10[%c0, %c0_5] : memref<8x128xbf16, #tpu.memory_space<vmem>>, vector<8x128xbf16>
      %c0_6 = arith.constant 0 : index
      %c0_7 = arith.constant 0 : index
      %12 = vector.load %arg5[%c0_6, %c0_7] : memref<128x512xbf16, #tpu.memory_space<vmem>>, vector<128x512xbf16>
      %cst = arith.constant dense<0.000000e+00> : vector<8x512xf32>
      %13 = tpu.matmul %11, %12, %cst {dimension_numbers = #tpu.dot_dimension_numbers<[1], [0], [0], [1], [0, 0, 1, 1], [], []>} : vector<8x128xbf16>, vector<128x512xbf16>, vector<8x512xf32> -> vector<8x512xf32>
      %c0_8 = arith.constant 0 : index
      %c0_9 = arith.constant 0 : index
      %14 = vector.load %arg3[%c0_8, %c0_9] : memref<1x512xf32, #tpu.memory_space<vmem>>, vector<1x512xf32>
      %15 = vector.broadcast %14 : vector<1x512xf32> to vector<8x512xf32>
      %16 = arith.addf %13, %15 : vector<8x512xf32>
      %c0_10 = arith.constant 0 : index
      %c0_11 = arith.constant 0 : index
      %17 = vector.load %arg8[%c0_10, %c0_11] : memref<8x512xf32, #tpu.memory_space<vmem>>, vector<8x512xf32>
      tpu.vector_store %arg8[%c0_10, %c0_11], %16 {strides = array<i32>} : memref<8x512xf32, #tpu.memory_space<vmem>>, vector<8x512xf32>,
    } else {
    }
    return
  }
  func.func @transform_0(%arg0: i32, %arg1: i32) -> (i32, i32) {
    %c1_i32 = arith.constant 1 : i32
    %0 = arith.subi %c1_i32, %arg0 : i32
    %1 = arith.muli %arg1, %0 : i32
    %c1_i32_0 = arith.constant 1 : i32
    %2 = arith.muli %c1_i32_0, %arg0 : i32
    %3 = arith.addi %1, %2 : i32
    %c0_i32 = arith.constant 0 : i32
    %c0_i32_1 = arith.constant 0 : i32
    return %c0_i32, %3 : i32, i32
  }
  func.func @transform_1(%arg0: i32, %arg1: i32) -> (i32, i32) {
    %c0_i32 = arith.constant 0 : i32
    %c0_i32_0 = arith.constant 0 : i32
    return %c0_i32, %arg1 : i32, i32
  }
  func.func @transform_2(%arg0: i32, %arg1: i32) -> (i32, i32) {
    %c1_i32 = arith.constant 1 : i32
    %0 = arith.subi %c1_i32, %arg0 : i32
    %1 = arith.muli %arg1, %0 : i32
    %c1_i32_0 = arith.constant 1 : i32
    %2 = arith.muli %c1_i32_0, %arg0 : i32
    %3 = arith.addi %1, %2 : i32
    %c0_i32 = arith.constant 0 : i32
    %c0_i32_1 = arith.constant 0 : i32
    return %3, %c0_i32 : i32, i32
  }
  func.func @transform_3(%arg0: i32, %arg1: i32) -> (i32, i32) {
    %0 = arith.muli %arg1, %arg0 : i32
    %c0_i32 = arith.constant 0 : i32
    %c0_i32_0 = arith.constant 0 : i32
    return %c0_i32, %0 : i32, i32
  }
  func.func @transform_4(%arg0: i32, %arg1: i32) -> (i32, i32) {
    %c0_i32 = arith.constant 0 : i32
    %c0_i32_0 = arith.constant 0 : i32
    %c0_i32_1 = arith.constant 0 : i32
    return %c0_i32, %c0_i32_0 : i32, i32
  }
  func.func @transform_5(%arg0: i32, %arg1: i32) -> (i32, i32) {
    %c0_i32 = arith.constant 0 : i32
    %c0_i32_0 = arith.constant 0 : i32
    %c0_i32_1 = arith.constant 0 : i32
    return %c0_i32, %c0_i32_0 : i32, i32
  }
  func.func @transform_6(%arg0: i32, %arg1: i32) -> (i32, i32) {
    %0 = arith.muli %arg1, %arg0 : i32
    %c0_i32 = arith.constant 0 : i32
    %c0_i32_0 = arith.constant 0 : i32
    return %c0_i32, %0 : i32, i32
  }
}

</mosaic_0001>

<llo_original>
// kernel: gaussian_denoise.1
$region0: #{gaussian_denoise.1}
  #allocation0 [shape = 'u32[]', space=smem, size = 0x4, offset = 0x4, fixed_abs, tag = 'smem constant byte address 0x4 - core index']
  #allocation1 [shape = 'u32[144,128]{1,0:T(1,128)}', space=vmem, size = 0x12000, scoped, tag = 'internal scratch']
  #allocation2 [shape = 'f32[8,128]{1,0:T(8,128)}', space=vmem, size = 0x1000, scoped, tag = 'scratch operand']
  #allocation3 [shape = 'bf16[8,128]{1,0:T(8,128)(2,1)}', space=vmem, size = 0x800, scoped, tag = 'scratch operand']
  %s0 = inlined_call_operand.vmem [shape: f32[8,1024], index: 0, kind: input, shape index: {}]
  %s1 = inlined_call_operand.vmem [shape: f32[1,1024], index: 1, kind: input, shape index: {}]
  %s2 = inlined_call_operand.hbm [shape: bf16[1024,128], index: 2, kind: input, shape index: {}]
  %s3 = inlined_call_operand.hbm [shape: bf16[128,1024], index: 3, kind: input, shape index: {}]
  %s4 = inlined_call_operand.vmem [shape: f32[8,1], index: 4, kind: input, shape index: {}]
  %s5 = inlined_call_operand.vmem [shape: f32[1,128], index: 5, kind: input, shape index: {}]
  %s6 = inlined_call_operand.vmem [shape: f32[8,1024], index: 6, kind: output, shape index: {}]
  %s7 = sld [smem:[#allocation0]]
  $region81: #{gaussian_denoise.1} parent=0
    _
  %s9 = ssub.s32 1, %s7
  %s10 = scalar_select 0, %s9, %s7
  $region1: #{gaussian_denoise.1} parent=0
    #allocation4 [shape = 'u8[262144]{0}', space=vmem, size = 0x40000, scoped, tag = 'input window, operand 2']
    #allocation5 [shape = 's32[2]{0}', space=sflag, size = 0x8, scoped, tag = 'scoped memory for gaussian_denoise.1']
    #allocation6 [shape = 'u8[262144]{0}', space=vmem, size = 0x40000, scoped, tag = 'input window, operand 3']
    #allocation7 [shape = 's32[2]{0}', space=sflag, size = 0x8, scoped, tag = 'scoped memory for gaussian_denoise.1']
    %11 = vsyncpa [#allocation5], 0
    %s12 = scalar_lea.sflag [#allocation5], 1
    %13 = vsyncpa %s12, 0
    %14 = vsyncpa [#allocation7], 0
    %s15 = scalar_lea.sflag [#allocation7], 1
    %16 = vsyncpa %s15, 0
    loop: start=0, step=1, limit=6
    $region2: #{gaussian_denoise.1} parent=1 // loop_pre_header
      _
    $region3: #{gaussian_denoise.1} parent=1 // loop_header
      %s18 = sphi 0, %s22
      %p19 = scmp.ge.s32.totalorder %s18, 6
      %s25 = sphi 0, %s37
      %s26 = sphi 0, %s33
      %s27 = sphi 0, %s25
      %s28 = sphi 0, %s26
      %s29 = sphi 0, %s27
      %s30 = sphi 0, %s28
      %s46 = sphi 0, %s48
      %s49 = sphi 0, %s46
      %s50 = sphi 0, %s49
      %s66 = sphi 0, %s50
      %s72 = sphi 0, %s74
      %s75 = sphi 0, %s72
      %s76 = sphi 0, %s75
      %s92 = sphi 0, %s76
      %s104 = sphi 0, %s106
      %s107 = sphi 0, %s104
      %s108 = sphi 0, %s107
      %s124 = sphi 0, %s108
      %s132 = sphi 0, %s134
      %s135 = sphi 0, %s132
      %s136 = sphi 0, %s135
      %s152 = sphi 0, %s136
      %s156 = sphi 0, %s156
      %s158 = sphi 0, %s156
      %s159 = sphi 0, %s158
      %s173 = sphi 0, %s159
      %s177 = sphi 0, %s177
      %s179 = sphi 0, %s177
      %s180 = sphi 0, %s179
      %s194 = sphi 0, %s180
      %s202 = sphi 0, %s204
      %s205 = sphi 0, %s202
      %s206 = sphi 0, %s205
      %s222 = sphi 0, %s206
    $region4: #{gaussian_denoise.1} parent=1 // loop_header_branch
      %21 = sbr.rel (%p19) target = $region8
    $region5: #{gaussian_denoise.1} parent=1 // loop_body
      %s23 = ssub.s32 %s18, 1
      %s24 = ssub.s32 %s18, 2
      %s31 = sadd.s32 1, %s26
      %p32 = scmp.ge.s32.totalorder %s31, 2
      %s33 = scalar_select %p32, 0, %s31
      %s34 = sadd.s32 1, %s25
      %s35 = scalar_select %p32, %s34, %s25
      %p36 = scmp.ge.s32.totalorder %s35, 2
      %s37 = scalar_select %p36, 0, %s35
      %s38 = ssub.s32 1, %s25
      %s39 = smul.u32 %s26, %s38
      %s40 = sadd.s32 %s39, %s25
      %s41 = ssub.s32 1, %s37
      %s42 = smul.u32 %s33, %s41
      %s43 = sadd.s32 %s42, %s37
      %s44 = ssub.s32 %s40, %s43
      %p45 = scmp.eq.s32.totalorder %s44, 0
      %s47 = sadd.s32 %s46, 1
      %s48 = scalar_select %p45, %s46, %s47
      %p51 = pneg %p45
      %p52 = scmp.eq.s32.totalorder %s18, 3
      %p53 = por %p51, %p52
      %p54 = scmp.ne.s32.totalorder %s46, %s49
      %p55 = scmp.eq.s32.totalorder %s18, 0
      %p56 = por %p54, %p55
      %p57 = scmp.ne.s32.totalorder %s46, %s49
      %p58 = scmp.eq.s32.totalorder %s23, 3
      %p59 = por %p57, %p58
      %p60 = scmp.ne.s32.totalorder %s49, %s50
      %p61 = scmp.eq.s32.totalorder %s23, 0
      %p62 = por %p60, %p61
      %p63 = scmp.ne.s32.totalorder %s49, %s50
      %p64 = scmp.eq.s32.totalorder %s24, 3
      %p65 = por %p63, %p64
      %p67 = scmp.ne.s32.totalorder %s50, %s66
      %p68 = scmp.eq.s32.totalorder %s24, 0
      %p69 = por %p67, %p68
      %s70 = ssub.s32 %s26, %s33
      %p71 = scmp.eq.s32.totalorder %s70, 0
      %s73 = sadd.s32 %s72, 1
      %s74 = scalar_select %p71, %s72, %s73
      %p77 = pneg %p71
      %p78 = scmp.eq.s32.totalorder %s18, 3
      %p79 = por %p77, %p78
      %p80 = scmp.ne.s32.totalorder %s72, %s75
      %p81 = scmp.eq.s32.totalorder %s18, 0
      %p82 = por %p80, %p81
      %p83 = scmp.ne.s32.totalorder %s72, %s75
      %p84 = scmp.eq.s32.totalorder %s23, 3
      %p85 = por %p83, %p84
      %p86 = scmp.ne.s32.totalorder %s75, %s76
      %p87 = scmp.eq.s32.totalorder %s23, 0
      %p88 = por %p86, %p87
      %p89 = scmp.ne.s32.totalorder %s75, %s76
      %p90 = scmp.eq.s32.totalorder %s24, 3
      %p91 = por %p89, %p90
      %p93 = scmp.ne.s32.totalorder %s76, %s92
      %p94 = scmp.eq.s32.totalorder %s24, 0
      %p95 = por %p93, %p94
      %s96 = ssub.s32 1, %s25
      %s97 = smul.u32 %s26, %s96
      %s98 = sadd.s32 %s97, %s25
      %s99 = ssub.s32 1, %s37
      %s100 = smul.u32 %s33, %s99
      %s101 = sadd.s32 %s100, %s37
      %s102 = ssub.s32 %s98, %s101
      %p103 = scmp.eq.s32.totalorder %s102, 0
      %s105 = sadd.s32 %s104, 1
      %s106 = scalar_select %p103, %s104, %s105
      %p109 = pneg %p103
      %p110 = scmp.eq.s32.totalorder %s18, 3
      %p111 = por %p109, %p110
      %p112 = scmp.ne.s32.totalorder %s104, %s107
      %p113 = scmp.eq.s32.totalorder %s18, 0
      %p114 = por %p112, %p113
      %p115 = scmp.ne.s32.totalorder %s104, %s107
      %p116 = scmp.eq.s32.totalorder %s23, 3
      %p117 = por %p115, %p116
      %p118 = scmp.ne.s32.totalorder %s107, %s108
      %p119 = scmp.eq.s32.totalorder %s23, 0
      %p120 = por %p118, %p119
      %p121 = scmp.ne.s32.totalorder %s107, %s108
      %p122 = scmp.eq.s32.totalorder %s24, 3
      %p123 = por %p121, %p122
      %p125 = scmp.ne.s32.totalorder %s108, %s124
      %p126 = scmp.eq.s32.totalorder %s24, 0
      %p127 = por %p125, %p126
      %s128 = smul.u32 %s26, %s25
      %s129 = smul.u32 %s33, %s37
      %s130 = ssub.s32 %s128, %s129
      %p131 = scmp.eq.s32.totalorder %s130, 0
      %s133 = sadd.s32 %s132, 1
      %s134 = scalar_select %p131, %s132, %s133
      %p137 = pneg %p131
      %p138 = scmp.eq.s32.totalorder %s18, 3
      %p139 = por %p137, %p138
      %p140 = scmp.ne.s32.totalorder %s132, %s135
      %p141 = scmp.eq.s32.totalorder %s18, 0
      %p142 = por %p140, %p141
      %p143 = scmp.ne.s32.totalorder %s132, %s135
      %p144 = scmp.eq.s32.totalorder %s23, 3
      %p145 = por %p143, %p144
      %p146 = scmp.ne.s32.totalorder %s135, %s136
      %p147 = scmp.eq.s32.totalorder %s23, 0
      %p148 = por %p146, %p147
      %p149 = scmp.ne.s32.totalorder %s135, %s136
      %p150 = scmp.eq.s32.totalorder %s24, 3
      %p151 = por %p149, %p150
      %p153 = scmp.ne.s32.totalorder %s136, %s152
      %p154 = scmp.eq.s32.totalorder %s24, 0
      %p155 = por %p153, %p154
      %s157 = sadd.s32 %s156, 1
      %p160 = scmp.eq.s32.totalorder %s18, 3
      %p161 = scmp.ne.s32.totalorder %s156, %s158
      %p162 = scmp.eq.s32.totalorder %s18, 0
      %p163 = por %p161, %p162
      %p164 = scmp.ne.s32.totalorder %s156, %s158
      %p165 = scmp.eq.s32.totalorder %s23, 3
      %p166 = por %p164, %p165
      %p167 = scmp.ne.s32.totalorder %s158, %s159
      %p168 = scmp.eq.s32.totalorder %s23, 0
      %p169 = por %p167, %p168
      %p170 = scmp.ne.s32.totalorder %s158, %s159
      %p171 = scmp.eq.s32.totalorder %s24, 3
      %p172 = por %p170, %p171
      %p174 = scmp.ne.s32.totalorder %s159, %s173
      %p175 = scmp.eq.s32.totalorder %s24, 0
      %p176 = por %p174, %p175
      %s178 = sadd.s32 %s177, 1
      %p181 = scmp.eq.s32.totalorder %s18, 3
      %p182 = scmp.ne.s32.totalorder %s177, %s179
      %p183 = scmp.eq.s32.totalorder %s18, 0
      %p184 = por %p182, %p183
      %p185 = scmp.ne.s32.totalorder %s177, %s179
      %p186 = scmp.eq.s32.totalorder %s23, 3
      %p187 = por %p185, %p186
      %p188 = scmp.ne.s32.totalorder %s179, %s180
      %p189 = scmp.eq.s32.totalorder %s23, 0
      %p190 = por %p188, %p189
      %p191 = scmp.ne.s32.totalorder %s179, %s180
      %p192 = scmp.eq.s32.totalorder %s24, 3
      %p193 = por %p191, %p192
      %p195 = scmp.ne.s32.totalorder %s180, %s194
      %p196 = scmp.eq.s32.totalorder %s24, 0
      %p197 = por %p195, %p196
      %s198 = smul.u32 %s26, %s25
      %s199 = smul.u32 %s33, %s37
      %s200 = ssub.s32 %s198, %s199
      %p201 = scmp.eq.s32.totalorder %s200, 0
      %s203 = sadd.s32 %s202, 1
      %s204 = scalar_select %p201, %s202, %s203
      %p207 = pneg %p201
      %p208 = scmp.eq.s32.totalorder %s18, 3
      %p209 = por %p207, %p208
      %p210 = scmp.ne.s32.totalorder %s202, %s205
      %p211 = scmp.eq.s32.totalorder %s18, 0
      %p212 = por %p210, %p211
      %p213 = scmp.ne.s32.totalorder %s202, %s205
      %p214 = scmp.eq.s32.totalorder %s23, 3
      %p215 = por %p213, %p214
      %p216 = scmp.ne.s32.totalorder %s205, %s206
      %p217 = scmp.eq.s32.totalorder %s23, 0
      %p218 = por %p216, %p217
      %p219 = scmp.ne.s32.totalorder %s205, %s206
      %p220 = scmp.eq.s32.totalorder %s24, 3
      %p221 = por %p219, %p220
      %p223 = scmp.ne.s32.totalorder %s206, %s222
      %p224 = scmp.eq.s32.totalorder %s24, 0
      %p225 = por %p223, %p224
      %p226 = scmp.le.s32.totalorder 1, %s18
      %p227 = scmp.lt.s32.totalorder %s18, 5
      %p228 = pnand %p226, %p227
      %p229 = pneg %p228
      // Predicated region
      $region9: #{gaussian_denoise.1} parent=5 // pred_check
        _
      $region10: #{gaussian_denoise.1} parent=5 // pred_check_branch
        %231 = sbr.rel (%p228) target = $region12
      $region11: #{gaussian_denoise.1} parent=5 // pred_region
        %s232 = ssub.s32 %s18, 1
        // Predicated region
        $region13: #{gaussian_denoise.1} parent=11 // pred_check
          %p233 = pneg %p169
        $region14: #{gaussian_denoise.1} parent=11 // pred_check_branch
          %235 = sbr.rel (%p233) target = $region16
        $region15: #{gaussian_denoise.1} parent=11 // pred_region
          _
        $region16: #{gaussian_denoise.1} parent=11 // pred_fallthru
          _
        // Predicated region
        $region17: #{gaussian_denoise.1} parent=11 // pred_check
          %p236 = pneg %p190
        $region18: #{gaussian_denoise.1} parent=11 // pred_check_branch
          %238 = sbr.rel (%p236) target = $region20
        $region19: #{gaussian_denoise.1} parent=11 // pred_region
          _
        $region20: #{gaussian_denoise.1} parent=11 // pred_fallthru
          _
      $region12: #{gaussian_denoise.1} parent=5 // pred_fallthru
        _
      %p239 = scmp.lt.s32.totalorder %s18, 4
      // Predicated region
      $region21: #{gaussian_denoise.1} parent=5 // pred_check
        %p240 = pneg %p239
      $region22: #{gaussian_denoise.1} parent=5 // pred_check_branch
        %242 = sbr.rel (%p240) target = $region24
      $region23: #{gaussian_denoise.1} parent=5 // pred_region
        // Predicated region
        $region25: #{gaussian_denoise.1} parent=23 // pred_check
          %p243 = pneg %p56
        $region26: #{gaussian_denoise.1} parent=23 // pred_check_branch
          %245 = sbr.rel (%p243) target = $region28
        $region27: #{gaussian_denoise.1} parent=23 // pred_region
          %s246 = ssub.s32 1, %s25
          %s247 = smul.u32 %s26, %s246
          %s248 = sadd.s32 %s247, %s25
          %s249 = smul.u32 4, %s248
          %p250 = scmp.lt.s32.totalorder %s249, 7
          %s251 = scalar_select %p250, %s249, 7
          %s252 = smul.addr %s251, 8
          %s253 = scalar_lea.vmem %s0, %s252
          %s254 = ssub.s32 1, %s25
          %s255 = smul.u32 %s26, %s254
          %s256 = sadd.s32 %s255, %s25
          %s257 = smul.u32 4, %s256
        $region28: #{gaussian_denoise.1} parent=23 // pred_fallthru
          _
        // Predicated region
        $region29: #{gaussian_denoise.1} parent=23 // pred_check
          %p258 = pneg %p82
        $region30: #{gaussian_denoise.1} parent=23 // pred_check_branch
          %260 = sbr.rel (%p258) target = $region32
        $region31: #{gaussian_denoise.1} parent=23 // pred_region
          %s261 = smul.u32 4, %s26
          %p262 = scmp.lt.s32.totalorder %s261, 7
          %s263 = scalar_select %p262, %s261, 7
          %s264 = scalar_lea.vmem %s1, %s263
          %s265 = smul.u32 4, %s26
        $region32: #{gaussian_denoise.1} parent=23 // pred_fallthru
          _
        // Predicated region
        $region33: #{gaussian_denoise.1} parent=23 // pred_check
          %p266 = pneg %p114
        $region34: #{gaussian_denoise.1} parent=23 // pred_check_branch
          %268 = sbr.rel (%p266) target = $region36
        $region35: #{gaussian_denoise.1} parent=23 // pred_region
          %s269 = sand.u32 %s104, 1
          %s270 = scalar_lea.sflag [#allocation5], %s269
          %s271 = sand.u32 %s104, 1
          %s272 = smul.addr %s271, 256
          %s273 = scalar_lea.vmem [#allocation4], %s272
          %s274 = ssub.s32 1, %s25
          %s275 = smul.u32 %s26, %s274
          %s276 = sadd.s32 %s275, %s25
          %s277 = smul.u32 64, %s276
          %s279 = ssub.s32 4096, 4096
          %280 = vsyncadd %s270, %s279
          %s281 = smul.addr %s277, 64
          %s282 = scalar_lea.hbm %s2, %s281
          %s283 = sshll.u32 %s273, 4
          %s284 = int_to_ptr.vmem [resolvable:$true] %s283
          %289 = dma.hbm_to_vmem [thread:$0]  %s282, 4096, %s284, %s270, 64, 64, 4
        $region36: #{gaussian_denoise.1} parent=23 // pred_fallthru
          _
        // Predicated region
        $region37: #{gaussian_denoise.1} parent=23 // pred_check
          %p290 = pneg %p142
        $region38: #{gaussian_denoise.1} parent=23 // pred_check_branch
          %292 = sbr.rel (%p290) target = $region40
        $region39: #{gaussian_denoise.1} parent=23 // pred_region
          %s293 = sand.u32 %s132, 1
          %s294 = scalar_lea.sflag [#allocation7], %s293
          %s295 = sand.u32 %s132, 1
          %s296 = smul.addr %s295, 256
          %s297 = scalar_lea.vmem [#allocation6], %s296
          %s298 = smul.u32 %s26, %s25
          %s299 = smul.u32 4, %s298
          %s301 = ssub.s32 4096, 4096
          %302 = vsyncadd %s294, %s301
          %s303 = smul.addr %s299, 64
          %s304 = scalar_lea.hbm %s3, %s303
          %s305 = sshll.u32 %s297, 4
          %s306 = int_to_ptr.vmem [resolvable:$true] %s305
          %311 = dma.hbm_to_vmem [thread:$0]  %s304, 4096, %s306, %s294, 512, 256, 16
        $region40: #{gaussian_denoise.1} parent=23 // pred_fallthru
          _
      $region24: #{gaussian_denoise.1} parent=5 // pred_fallthru
        _
      %p312 = scmp.le.s32.totalorder 1, %s18
      %p313 = scmp.lt.s32.totalorder %s18, 5
      %p314 = pnand %p312, %p313
      %p315 = pneg %p314
      // Predicated region
      $region41: #{gaussian_denoise.1} parent=5 // pred_check
        _
      $region42: #{gaussian_denoise.1} parent=5 // pred_check_branch
        %317 = sbr.rel (%p314) target = $region44
      $region43: #{gaussian_denoise.1} parent=5 // pred_region
        %s318 = ssub.s32 %s18, 1
        %s319 = sand.u32 %s107, 1
        %s320 = scalar_lea.sflag [#allocation5], %s319
        %s321 = sand.u32 %s107, 1
        %s322 = smul.addr %s321, 256
        %s323 = scalar_lea.vmem [#allocation4], %s322
        // Predicated region
        $region45: #{gaussian_denoise.1} parent=43 // pred_check
          %p324 = pneg %p120
        $region46: #{gaussian_denoise.1} parent=43 // pred_check_branch
          %326 = sbr.rel (%p324) target = $region48
        $region47: #{gaussian_denoise.1} parent=43 // pred_region
          %327 = dma.done %s320, 4096
        $region48: #{gaussian_denoise.1} parent=43 // pred_fallthru
          _
        %s328 = sand.u32 %s135, 1
        %s329 = scalar_lea.sflag [#allocation7], %s328
        %s330 = sand.u32 %s135, 1
        %s331 = smul.addr %s330, 256
        %s332 = scalar_lea.vmem [#allocation6], %s331
        // Predicated region
        $region49: #{gaussian_denoise.1} parent=43 // pred_check
          %p333 = pneg %p148
        $region50: #{gaussian_denoise.1} parent=43 // pred_check_branch
          %335 = sbr.rel (%p333) target = $region52
        $region51: #{gaussian_denoise.1} parent=43 // pred_region
          %336 = dma.done %s329, 4096
        $region52: #{gaussian_denoise.1} parent=43 // pred_fallthru
          _
        %s337 = ssub.s32 1, %s27
        %s338 = smul.u32 %s28, %s337
        %s339 = sadd.s32 %s338, %s27
        %s340 = smul.u32 4, %s339
        %p341 = scmp.lt.s32.totalorder %s340, 7
        %s342 = scalar_select %p341, %s340, 7
        %s343 = smul.addr %s342, 8
        %s344 = scalar_lea.vmem %s0, %s343
        %p345 = pneg %p62
        %p346 = pneg %p59
        %s347 = smul.u32 4, %s28
        %p348 = scmp.lt.s32.totalorder %s347, 7
        %s349 = scalar_select %p348, %s347, 7
        %s350 = scalar_lea.vmem %s1, %s349
        %p351 = pneg %p88
        %p352 = pneg %p85
        %s353 = sand.u32 %s107, 1
        %s354 = scalar_lea.sflag [#allocation5], %s353
        %s355 = sand.u32 %s107, 1
        %s356 = smul.addr %s355, 256
        %s357 = scalar_lea.vmem [#allocation4], %s356
        %p358 = pneg %p120
        %p359 = pneg %p117
        %s360 = sand.u32 %s135, 1
        %s361 = scalar_lea.sflag [#allocation7], %s360
        %s362 = sand.u32 %s135, 1
        %s363 = smul.addr %s362, 256
        %s364 = scalar_lea.vmem [#allocation6], %s363
        %p365 = pneg %p148
        %p366 = pneg %p145
        %p367 = pneg %p169
        %p368 = pneg %p166
        %p369 = pneg %p190
        %p370 = pneg %p187
        %p371 = pneg %p218
        %p372 = pneg %p215
        %s373 = smul.u32 %s28, %s27
        %s374 = smul.u32 4, %s373
        %p375 = scmp.lt.s32.totalorder %s374, 7
        %s376 = scalar_select %p375, %s374, 7
        %s377 = smul.addr %s376, 8
        %s378 = scalar_lea.vmem %s6, %s377
        %s379 = ssub.s32 1, %s27
        %s380 = smul.u32 %s28, %s379
        %s381 = sadd.s32 %s380, %s27
        %s382 = smul.u32 4, %s381
        %p383 = scmp.lt.s32.totalorder %s382, 7
        %s384 = scalar_select %p383, %s382, 7
        %s385 = smul.addr %s384, 8
        %s386 = scalar_lea.vmem %s0, %s385
        %s387 = ssub.s32 1, %s27
        %s388 = smul.u32 %s28, %s387
        %s389 = sadd.s32 %s388, %s27
        %s390 = smul.u32 4, %s389
        %s391 = smul.u32 4, %s28
        %p392 = scmp.lt.s32.totalorder %s391, 7
        %s393 = scalar_select %p392, %s391, 7
        %s394 = scalar_lea.vmem %s1, %s393
        %s395 = smul.u32 4, %s28
        %s396 = ssub.s32 1, %s27
        %s397 = smul.u32 %s28, %s396
        %s398 = sadd.s32 %s397, %s27
        %s399 = smul.u32 64, %s398
        %s400 = smul.u32 %s28, %s27
        %s401 = smul.u32 4, %s400
        %s402 = smul.u32 %s28, %s27
        %s403 = smul.u32 4, %s402
        %p404 = scmp.lt.s32.totalorder %s403, 7
        %s405 = scalar_select %p404, %s403, 7
        %s406 = smul.addr %s405, 8
        %s407 = scalar_lea.vmem %s6, %s406
        %s408 = smul.u32 %s28, %s27
        %s409 = smul.u32 4, %s408
        %p411 = scmp.eq.s32.totalorder %s27, 0
        %p412 = scmp.eq.s32.totalorder %s28, 0
        %p413 = pnand %p411, %p412
        %p414 = pneg %p413
        // Predicated region
        $region53: #{gaussian_denoise.1} parent=43 // pred_check
          _
        $region54: #{gaussian_denoise.1} parent=43 // pred_check_branch
          %416 = sbr.rel (%p413) target = $region56
        $region55: #{gaussian_denoise.1} parent=43 // pred_region
          %417 = vst [vmem:[#allocation2] sm:$0xff] 0.0
        $region56: #{gaussian_denoise.1} parent=43 // pred_fallthru
          _
        // Predicated region
        $region57: #{gaussian_denoise.1} parent=43 // pred_check
          %p418 = pneg %p411
        $region58: #{gaussian_denoise.1} parent=43 // pred_check_branch
          %420 = sbr.rel (%p418) target = $region60
        $region59: #{gaussian_denoise.1} parent=43 // pred_region
          %v421 = vld [vmem:[%s386] sm:$0xff]
          %v422 = vld [vmem:[%s386 + $0x8] sm:$0xff]
          %v423 = vld [vmem:[%s386 + $0x10] sm:$0xff]
          %v424 = vld [vmem:[%s386 + $0x18] sm:$0xff]
          %v425 = vld [vmem:[%s394] sm:$0xf]
          %v427 = vlaneseq
          %v428 = vshrl.u32 %v427, 7
          %v429 = vsub.s32 0, %v428
          %v430 = vrot.slane %v425, %v429
          %v431 = vlaneseq
          %v432 = vshrl.u32 %v431, 7
          %v433 = vsub.s32 1, %v432
          %v434 = vrot.slane %v425, %v433
          %v435 = vlaneseq
          %v436 = vshrl.u32 %v435, 7
          %v437 = vsub.s32 2, %v436
          %v438 = vrot.slane %v425, %v437
          %v439 = vlaneseq
          %v440 = vshrl.u32 %v439, 7
          %v441 = vsub.s32 3, %v440
          %v442 = vrot.slane %v425, %v441
          %v447 = vsub.f32 %v421, %v430
          %v448 = vsub.f32 %v422, %v434
          %v449 = vsub.f32 %v423, %v438
          %v450 = vsub.f32 %v424, %v442
          %v451 = vpack.c.bf16 %v447, %v447
          %v452 = vpack.c.bf16 %v448, %v448
          %v453 = vpack.c.bf16 %v449, %v449
          %v454 = vpack.c.bf16 %v450, %v450
          %v455 = vld [vmem:[#allocation2] sm:$0xff]
          %v456 = vld [vmem:[%s323] sm:$0xf]
          %v457 = vld [vmem:[%s323 + $0x4] sm:$0xf]
          %v458 = vld [vmem:[%s323 + $0x8] sm:$0xf]
          %v459 = vld [vmem:[%s323 + $0xc] sm:$0xf]
          %v460 = vld [vmem:[%s323 + $0x10] sm:$0xf]
          %v461 = vld [vmem:[%s323 + $0x14] sm:$0xf]
          %v462 = vld [vmem:[%s323 + $0x18] sm:$0xf]
          %v463 = vld [vmem:[%s323 + $0x1c] sm:$0xf]
          %v464 = vld [vmem:[%s323 + $0x20] sm:$0xf]
          %v465 = vld [vmem:[%s323 + $0x24] sm:$0xf]
          %v466 = vld [vmem:[%s323 + $0x28] sm:$0xf]
          %v467 = vld [vmem:[%s323 + $0x2c] sm:$0xf]
          %v468 = vld [vmem:[%s323 + $0x30] sm:$0xf]
          %v469 = vld [vmem:[%s323 + $0x34] sm:$0xf]
          %v470 = vld [vmem:[%s323 + $0x38] sm:$0xf]
          %v471 = vld [vmem:[%s323 + $0x3c] sm:$0xf]
          %v472 = vld [vmem:[%s323 + $0x40] sm:$0xf]
          %v473 = vld [vmem:[%s323 + $0x44] sm:$0xf]
          %v474 = vld [vmem:[%s323 + $0x48] sm:$0xf]
          %v475 = vld [vmem:[%s323 + $0x4c] sm:$0xf]
          %v476 = vld [vmem:[%s323 + $0x50] sm:$0xf]
          %v477 = vld [vmem:[%s323 + $0x54] sm:$0xf]
          %v478 = vld [vmem:[%s323 + $0x58] sm:$0xf]
          %v479 = vld [vmem:[%s323 + $0x5c] sm:$0xf]
          %v480 = vld [vmem:[%s323 + $0x60] sm:$0xf]
          %v481 = vld [vmem:[%s323 + $0x64] sm:$0xf]
          %v482 = vld [vmem:[%s323 + $0x68] sm:$0xf]
          %v483 = vld [vmem:[%s323 + $0x6c] sm:$0xf]
          %v484 = vld [vmem:[%s323 + $0x70] sm:$0xf]
          %v485 = vld [vmem:[%s323 + $0x74] sm:$0xf]
          %v486 = vld [vmem:[%s323 + $0x78] sm:$0xf]
          %v487 = vld [vmem:[%s323 + $0x7c] sm:$0xf]
          %v488 = vld [vmem:[%s323 + $0x80] sm:$0xf]
          %v489 = vld [vmem:[%s323 + $0x84] sm:$0xf]
          %v490 = vld [vmem:[%s323 + $0x88] sm:$0xf]
          %v491 = vld [vmem:[%s323 + $0x8c] sm:$0xf]
          %v492 = vld [vmem:[%s323 + $0x90] sm:$0xf]
          %v493 = vld [vmem:[%s323 + $0x94] sm:$0xf]
          %v494 = vld [vmem:[%s323 + $0x98] sm:$0xf]
          %v495 = vld [vmem:[%s323 + $0x9c] sm:$0xf]
          %v496 = vld [vmem:[%s323 + $0xa0] sm:$0xf]
          %v497 = vld [vmem:[%s323 + $0xa4] sm:$0xf]
          %v498 = vld [vmem:[%s323 + $0xa8] sm:$0xf]
          %v499 = vld [vmem:[%s323 + $0xac] sm:$0xf]
          %v500 = vld [vmem:[%s323 + $0xb0] sm:$0xf]
          %v501 = vld [vmem:[%s323 + $0xb4] sm:$0xf]
          %v502 = vld [vmem:[%s323 + $0xb8] sm:$0xf]
          %v503 = vld [vmem:[%s323 + $0xbc] sm:$0xf]
          %v504 = vld [vmem:[%s323 + $0xc0] sm:$0xf]
          %v505 = vld [vmem:[%s323 + $0xc4] sm:$0xf]
          %v506 = vld [vmem:[%s323 + $0xc8] sm:$0xf]
          %v507 = vld [vmem:[%s323 + $0xcc] sm:$0xf]
          %v508 = vld [vmem:[%s323 + $0xd0] sm:$0xf]
          %v509 = vld [vmem:[%s323 + $0xd4] sm:$0xf]
          %v510 = vld [vmem:[%s323 + $0xd8] sm:$0xf]
          %v511 = vld [vmem:[%s323 + $0xdc] sm:$0xf]
          %v512 = vld [vmem:[%s323 + $0xe0] sm:$0xf]
          %v513 = vld [vmem:[%s323 + $0xe4] sm:$0xf]
          %v514 = vld [vmem:[%s323 + $0xe8] sm:$0xf]
          %v515 = vld [vmem:[%s323 + $0xec] sm:$0xf]
          %v516 = vld [vmem:[%s323 + $0xf0] sm:$0xf]
          %v517 = vld [vmem:[%s323 + $0xf4] sm:$0xf]
          %v518 = vld [vmem:[%s323 + $0xf8] sm:$0xf]
          %v519 = vld [vmem:[%s323 + $0xfc] sm:$0xf]
          %v584 = vunpack.c.l.b16 %v456
          %v585 = vunpack.c.l.b16 %v457
          %v586 = vunpack.c.l.b16 %v458
          %v587 = vunpack.c.l.b16 %v459
          %v588 = vunpack.c.l.b16 %v460
          %v589 = vunpack.c.l.b16 %v461
          %v590 = vunpack.c.l.b16 %v462
          %v591 = vunpack.c.l.b16 %v463
          %v592 = vunpack.c.l.b16 %v464
          %v593 = vunpack.c.l.b16 %v465
          %v594 = vunpack.c.l.b16 %v466
          %v595 = vunpack.c.l.b16 %v467
          %v596 = vunpack.c.l.b16 %v468
          %v597 = vunpack.c.l.b16 %v469
          %v598 = vunpack.c.l.b16 %v470
          %v599 = vunpack.c.l.b16 %v471
          %v600 = vunpack.c.l.b16 %v472
          %v601 = vunpack.c.l.b16 %v473
          %v602 = vunpack.c.l.b16 %v474
          %v603 = vunpack.c.l.b16 %v475
          %v604 = vunpack.c.l.b16 %v476
          %v605 = vunpack.c.l.b16 %v477
          %v606 = vunpack.c.l.b16 %v478
          %v607 = vunpack.c.l.b16 %v479
          %v608 = vunpack.c.l.b16 %v480
          %v609 = vunpack.c.l.b16 %v481
          %v610 = vunpack.c.l.b16 %v482
          %v611 = vunpack.c.l.b16 %v483
          %v612 = vunpack.c.l.b16 %v484
          %v613 = vunpack.c.l.b16 %v485
          %v614 = vunpack.c.l.b16 %v486
          %v615 = vunpack.c.l.b16 %v487
          %v616 = vunpack.c.l.b16 %v488
          %v617 = vunpack.c.l.b16 %v489
          %v618 = vunpack.c.l.b16 %v490
          %v619 = vunpack.c.l.b16 %v491
          %v620 = vunpack.c.l.b16 %v492
          %v621 = vunpack.c.l.b16 %v493
          %v622 = vunpack.c.l.b16 %v494
          %v623 = vunpack.c.l.b16 %v495
          %v624 = vunpack.c.l.b16 %v496
          %v625 = vunpack.c.l.b16 %v497
          %v626 = vunpack.c.l.b16 %v498
          %v627 = vunpack.c.l.b16 %v499
          %v628 = vunpack.c.l.b16 %v500
          %v629 = vunpack.c.l.b16 %v501
          %v630 = vunpack.c.l.b16 %v502
          %v631 = vunpack.c.l.b16 %v503
          %v632 = vunpack.c.l.b16 %v504
          %v633 = vunpack.c.l.b16 %v505
          %v634 = vunpack.c.l.b16 %v506
          %v635 = vunpack.c.l.b16 %v507
          %v636 = vunpack.c.l.b16 %v508
          %v637 = vunpack.c.l.b16 %v509
          %v638 = vunpack.c.l.b16 %v510
          %v639 = vunpack.c.l.b16 %v511
          %v640 = vunpack.c.l.b16 %v512
          %v641 = vunpack.c.l.b16 %v513
          %v642 = vunpack.c.l.b16 %v514
          %v643 = vunpack.c.l.b16 %v515
          %v644 = vunpack.c.l.b16 %v516
          %v645 = vunpack.c.l.b16 %v517
          %v646 = vunpack.c.l.b16 %v518
          %v647 = vunpack.c.l.b16 %v519
          %v648 = vpack.c.b16 %v585, %v584
          %v649 = vpack.c.b16 %v587, %v586
          %v650 = vpack.c.b16 %v589, %v588
          %v651 = vpack.c.b16 %v591, %v590
          %v652 = vpack.c.b16 %v593, %v592
          %v653 = vpack.c.b16 %v595, %v594
          %v654 = vpack.c.b16 %v597, %v596
          %v655 = vpack.c.b16 %v599, %v598
          %v656 = vpack.c.b16 %v601, %v600
          %v657 = vpack.c.b16 %v603, %v602
          %v658 = vpack.c.b16 %v605, %v604
          %v659 = vpack.c.b16 %v607, %v606
          %v660 = vpack.c.b16 %v609, %v608
          %v661 = vpack.c.b16 %v611, %v610
          %v662 = vpack.c.b16 %v613, %v612
          %v663 = vpack.c.b16 %v615, %v614
          %v664 = vpack.c.b16 %v617, %v616
          %v665 = vpack.c.b16 %v619, %v618
          %v666 = vpack.c.b16 %v621, %v620
          %v667 = vpack.c.b16 %v623, %v622
          %v668 = vpack.c.b16 %v625, %v624
          %v669 = vpack.c.b16 %v627, %v626
          %v670 = vpack.c.b16 %v629, %v628
          %v671 = vpack.c.b16 %v631, %v630
          %v672 = vpack.c.b16 %v633, %v632
          %v673 = vpack.c.b16 %v635, %v634
          %v674 = vpack.c.b16 %v637, %v636
          %v675 = vpack.c.b16 %v639, %v638
          %v676 = vpack.c.b16 %v641, %v640
          %v677 = vpack.c.b16 %v643, %v642
          %v678 = vpack.c.b16 %v645, %v644
          %v679 = vpack.c.b16 %v647, %v646
          %712 = vmatprep.subr.bf16.mxu0 0
          %713 = vmatpush1.bf16.msra.mxu0 %v648
          %714 = vmatprep.subr.bf16.mxu0 0
          %715 = vmatpush1.bf16.msra.mxu0 %v649
          %716 = vmatprep.subr.bf16.mxu0 0
          %717 = vmatpush1.bf16.msra.mxu0 %v650
          %718 = vmatprep.subr.bf16.mxu0 0
          %719 = vmatpush1.bf16.msra.mxu0 %v651
          %720 = vmatprep.subr.bf16.mxu0 0
          %721 = vmatpush1.bf16.msra.mxu0 %v652
          %722 = vmatprep.subr.bf16.mxu0 0
          %723 = vmatpush1.bf16.msra.mxu0 %v653
          %724 = vmatprep.subr.bf16.mxu0 0
          %725 = vmatpush1.bf16.msra.mxu0 %v654
          %726 = vmatprep.subr.bf16.mxu0 0
          %727 = vmatpush1.bf16.msra.mxu0 %v655
          %728 = vmatprep.subr.bf16.mxu0 0
          %729 = vmatpush1.bf16.msra.mxu0 %v656
          %730 = vmatprep.subr.bf16.mxu0 0
          %731 = vmatpush1.bf16.msra.mxu0 %v657
          %732 = vmatprep.subr.bf16.mxu0 0
          %733 = vmatpush1.bf16.msra.mxu0 %v658
          %734 = vmatprep.subr.bf16.mxu0 0
          %735 = vmatpush1.bf16.msra.mxu0 %v659
          %736 = vmatprep.subr.bf16.mxu0 0
          %737 = vmatpush1.bf16.msra.mxu0 %v660
          %738 = vmatprep.subr.bf16.mxu0 0
          %739 = vmatpush1.bf16.msra.mxu0 %v661
          %740 = vmatprep.subr.bf16.mxu0 0
          %741 = vmatpush1.bf16.msra.mxu0 %v662
          %742 = vmatprep.subr.bf16.mxu0 0
          %743 = vmatpush1.bf16.msra.mxu0 %v663
          %744 = vmatprep.mubr.bf16.mxu0 %v452
          %745 = vmatmul.mubr.bf16.gmra.mrb[0].mxu0 %v451
          %v746 = vpop.f32.mrb[0].mxu0
          %v747 = vadd.f32 0.0, %v746
          %v748 = vpop.f32.mrb[0].mxu0
          %v749 = vpop.f32.mrb[0].mxu0
          %v750 = vpop.f32.mrb[0].mxu0
          %751 = vdwg.mxu0
          %752 = vmatprep.subr.bf16.mxu0 0
          %753 = vmatpush1.bf16.msra.mxu0 %v664
          %754 = vmatprep.subr.bf16.mxu0 0
          %755 = vmatpush1.bf16.msra.mxu0 %v665
          %756 = vmatprep.subr.bf16.mxu0 0
          %757 = vmatpush1.bf16.msra.mxu0 %v666
          %758 = vmatprep.subr.bf16.mxu0 0
          %759 = vmatpush1.bf16.msra.mxu0 %v667
          %760 = vmatprep.subr.bf16.mxu0 0
          %761 = vmatpush1.bf16.msra.mxu0 %v668
          %762 = vmatprep.subr.bf16.mxu0 0
          %763 = vmatpush1.bf16.msra.mxu0 %v669
          %764 = vmatprep.subr.bf16.mxu0 0
          %765 = vmatpush1.bf16.msra.mxu0 %v670
          %766 = vmatprep.subr.bf16.mxu0 0
          %767 = vmatpush1.bf16.msra.mxu0 %v671
          %768 = vmatprep.subr.bf16.mxu0 0
          %769 = vmatpush1.bf16.msra.mxu0 %v672
          %770 = vmatprep.subr.bf16.mxu0 0
          %771 = vmatpush1.bf16.msra.mxu0 %v673
          %772 = vmatprep.subr.bf16.mxu0 0
          %773 = vmatpush1.bf16.msra.mxu0 %v674
          %774 = vmatprep.subr.bf16.mxu0 0
          %775 = vmatpush1.bf16.msra.mxu0 %v675
          %776 = vmatprep.subr.bf16.mxu0 0
          %777 = vmatpush1.bf16.msra.mxu0 %v676
          %778 = vmatprep.subr.bf16.mxu0 0
          %779 = vmatpush1.bf16.msra.mxu0 %v677
          %780 = vmatprep.subr.bf16.mxu0 0
          %781 = vmatpush1.bf16.msra.mxu0 %v678
          %782 = vmatprep.subr.bf16.mxu0 0
          %783 = vmatpush1.bf16.msra.mxu0 %v679
          %784 = vmatprep.mubr.bf16.mxu0 %v454
          %785 = vmatmul.mubr.bf16.gmra.mrb[0].mxu0 %v453
          %v786 = vpop.f32.mrb[0].mxu0
          %v787 = vadd.f32 %v747, %v786
          %v788 = vpop.f32.mrb[0].mxu0
          %v789 = vpop.f32.mrb[0].mxu0
          %v790 = vpop.f32.mrb[0].mxu0
          %791 = vdwg.mxu0
          %v792 = vadd.f32 %v455, %v787
          %793 = vst [vmem:[#allocation2] sm:$0xff] %v792
          %p794 = scmp.eq.s32.totalorder %s28, 1
          // Predicated region
          $region61: #{gaussian_denoise.1} parent=59 // pred_check
            %p795 = pneg %p794
          $region62: #{gaussian_denoise.1} parent=59 // pred_check_branch
            %797 = sbr.rel (%p795) target = $region64
          $region63: #{gaussian_denoise.1} parent=59 // pred_region
            %v798 = vld [vmem:[%s4] sm:$0xff]
            %v799 = vld [vmem:[%s5] sm:$0x1]
            %v800 = vmul.f32 %v798, %v798
            %v802 = vlaneseq
            %v803 = vshrl.u32 %v802, 7
            %v804 = vsub.s32 0, %v803
            %v805 = vrot.slane %v799, %v804
            %808 = vset.pattern.permute.xlu0 0
            %809 = vperm.xlu0 %808, %v800
            %v810 = vpop.permute.xlu0 %809
            %v812 = vadd.f32 %v805, %v810
            %v813 = vrcp.pop %v812
            %v814 = vmul.f32 %v805, %v813
            %v815 = vld [vmem:[#allocation2] sm:$0xff]
            %v816 = vmul.f32 %v815, %v814
            %v817 = vpack.c.bf16 %v816, %v816
            %818 = vst [vmem:[#allocation3] sm:$0xf] %v817
          $region64: #{gaussian_denoise.1} parent=59 // pred_fallthru
            _
        $region60: #{gaussian_denoise.1} parent=43 // pred_fallthru
          _
        %p819 = scmp.eq.s32.totalorder %s27, 1
        // Predicated region
        $region65: #{gaussian_denoise.1} parent=43 // pred_check
          %p820 = pneg %p819
        $region66: #{gaussian_denoise.1} parent=43 // pred_check_branch
          %822 = sbr.rel (%p820) target = $region68
        $region67: #{gaussian_denoise.1} parent=43 // pred_region
          %v823 = vld [vmem:[#allocation3] sm:$0xf]
          %v824 = vld [vmem:[%s332] sm:$0xff]
          %v825 = vld [vmem:[%s332 + $0x8] sm:$0xff]
          %v826 = vld [vmem:[%s332 + $0x10] sm:$0xff]
          %v827 = vld [vmem:[%s332 + $0x18] sm:$0xff]
          %v828 = vld [vmem:[%s332 + $0x20] sm:$0xff]
          %v829 = vld [vmem:[%s332 + $0x28] sm:$0xff]
          %v830 = vld [vmem:[%s332 + $0x30] sm:$0xff]
          %v831 = vld [vmem:[%s332 + $0x38] sm:$0xff]
          %v832 = vld [vmem:[%s332 + $0x40] sm:$0xff]
          %v833 = vld [vmem:[%s332 + $0x48] sm:$0xff]
          %v834 = vld [vmem:[%s332 + $0x50] sm:$0xff]
          %v835 = vld [vmem:[%s332 + $0x58] sm:$0xff]
          %v836 = vld [vmem:[%s332 + $0x60] sm:$0xff]
          %v837 = vld [vmem:[%s332 + $0x68] sm:$0xff]
          %v838 = vld [vmem:[%s332 + $0x70] sm:$0xff]
          %v839 = vld [vmem:[%s332 + $0x78] sm:$0xff]
          %v840 = vld [vmem:[%s332 + $0x80] sm:$0xff]
          %v841 = vld [vmem:[%s332 + $0x88] sm:$0xff]
          %v842 = vld [vmem:[%s332 + $0x90] sm:$0xff]
          %v843 = vld [vmem:[%s332 + $0x98] sm:$0xff]
          %v844 = vld [vmem:[%s332 + $0xa0] sm:$0xff]
          %v845 = vld [vmem:[%s332 + $0xa8] sm:$0xff]
          %v846 = vld [vmem:[%s332 + $0xb0] sm:$0xff]
          %v847 = vld [vmem:[%s332 + $0xb8] sm:$0xff]
          %v848 = vld [vmem:[%s332 + $0xc0] sm:$0xff]
          %v849 = vld [vmem:[%s332 + $0xc8] sm:$0xff]
          %v850 = vld [vmem:[%s332 + $0xd0] sm:$0xff]
          %v851 = vld [vmem:[%s332 + $0xd8] sm:$0xff]
          %v852 = vld [vmem:[%s332 + $0xe0] sm:$0xff]
          %v853 = vld [vmem:[%s332 + $0xe8] sm:$0xff]
          %v854 = vld [vmem:[%s332 + $0xf0] sm:$0xff]
          %v855 = vld [vmem:[%s332 + $0xf8] sm:$0xff]
          %v856 = vld [vmem:[%s394] sm:$0xf]
          %v858 = vlaneseq
          %v859 = vshrl.u32 %v858, 7
          %v860 = vsub.s32 0, %v859
          %v861 = vrot.slane %v856, %v860
          %v862 = vlaneseq
          %v863 = vshrl.u32 %v862, 7
          %v864 = vsub.s32 1, %v863
          %v865 = vrot.slane %v856, %v864
          %v866 = vlaneseq
          %v867 = vshrl.u32 %v866, 7
          %v868 = vsub.s32 2, %v867
          %v869 = vrot.slane %v856, %v868
          %v870 = vlaneseq
          %v871 = vshrl.u32 %v870, 7
          %v872 = vsub.s32 3, %v871
          %v873 = vrot.slane %v856, %v872
          %v910 = vunpack.c.l.b16 %v824
          %v911 = vunpack.c.h.b16 %v824
          %v912 = vunpack.c.l.b16 %v825
          %v913 = vunpack.c.h.b16 %v825
          %v914 = vunpack.c.l.b16 %v826
          %v915 = vunpack.c.h.b16 %v826
          %v916 = vunpack.c.l.b16 %v827
          %v917 = vunpack.c.h.b16 %v827
          %v918 = vunpack.c.l.b16 %v828
          %v919 = vunpack.c.h.b16 %v828
          %v920 = vunpack.c.l.b16 %v829
          %v921 = vunpack.c.h.b16 %v829
          %v922 = vunpack.c.l.b16 %v830
          %v923 = vunpack.c.h.b16 %v830
          %v924 = vunpack.c.l.b16 %v831
          %v925 = vunpack.c.h.b16 %v831
          %v926 = vunpack.c.l.b16 %v832
          %v927 = vunpack.c.h.b16 %v832
          %v928 = vunpack.c.l.b16 %v833
          %v929 = vunpack.c.h.b16 %v833
          %v930 = vunpack.c.l.b16 %v834
          %v931 = vunpack.c.h.b16 %v834
          %v932 = vunpack.c.l.b16 %v835
          %v933 = vunpack.c.h.b16 %v835
          %v934 = vunpack.c.l.b16 %v836
          %v935 = vunpack.c.h.b16 %v836
          %v936 = vunpack.c.l.b16 %v837
          %v937 = vunpack.c.h.b16 %v837
          %v938 = vunpack.c.l.b16 %v838
          %v939 = vunpack.c.h.b16 %v838
          %v940 = vunpack.c.l.b16 %v839
          %v941 = vunpack.c.h.b16 %v839
          %v942 = vunpack.c.l.b16 %v840
          %v943 = vunpack.c.h.b16 %v840
          %v944 = vunpack.c.l.b16 %v841
          %v945 = vunpack.c.h.b16 %v841
          %v946 = vunpack.c.l.b16 %v842
          %v947 = vunpack.c.h.b16 %v842
          %v948 = vunpack.c.l.b16 %v843
          %v949 = vunpack.c.h.b16 %v843
          %v950 = vunpack.c.l.b16 %v844
          %v951 = vunpack.c.h.b16 %v844
          %v952 = vunpack.c.l.b16 %v845
          %v953 = vunpack.c.h.b16 %v845
          %v954 = vunpack.c.l.b16 %v846
          %v955 = vunpack.c.h.b16 %v846
          %v956 = vunpack.c.l.b16 %v847
          %v957 = vunpack.c.h.b16 %v847
          %v958 = vunpack.c.l.b16 %v848
          %v959 = vunpack.c.h.b16 %v848
          %v960 = vunpack.c.l.b16 %v849
          %v961 = vunpack.c.h.b16 %v849
          %v962 = vunpack.c.l.b16 %v850
          %v963 = vunpack.c.h.b16 %v850
          %v964 = vunpack.c.l.b16 %v851
          %v965 = vunpack.c.h.b16 %v851
          %v966 = vunpack.c.l.b16 %v852
          %v967 = vunpack.c.h.b16 %v852
          %v968 = vunpack.c.l.b16 %v853
          %v969 = vunpack.c.h.b16 %v853
          %v970 = vunpack.c.l.b16 %v854
          %v971 = vunpack.c.h.b16 %v854
          %v972 = vunpack.c.l.b16 %v855
          %v973 = vunpack.c.h.b16 %v855
          %v974 = vpack.c.b16 %v914, %v910
          %v975 = vpack.c.b16 %v915, %v911
          %v976 = vpack.c.b16 %v916, %v912
          %v977 = vpack.c.b16 %v917, %v913
          %v978 = vpack.c.b16 %v922, %v918
          %v979 = vpack.c.b16 %v923, %v919
          %v980 = vpack.c.b16 %v924, %v920
          %v981 = vpack.c.b16 %v925, %v921
          %v982 = vpack.c.b16 %v930, %v926
          %v983 = vpack.c.b16 %v931, %v927
          %v984 = vpack.c.b16 %v932, %v928
          %v985 = vpack.c.b16 %v933, %v929
          %v986 = vpack.c.b16 %v938, %v934
          %v987 = vpack.c.b16 %v939, %v935
          %v988 = vpack.c.b16 %v940, %v936
          %v989 = vpack.c.b16 %v941, %v937
          %v990 = vpack.c.b16 %v946, %v942
          %v991 = vpack.c.b16 %v947, %v943
          %v992 = vpack.c.b16 %v948, %v944
          %v993 = vpack.c.b16 %v949, %v945
          %v994 = vpack.c.b16 %v954, %v950
          %v995 = vpack.c.b16 %v955, %v951
          %v996 = vpack.c.b16 %v956, %v952
          %v997 = vpack.c.b16 %v957, %v953
          %v998 = vpack.c.b16 %v962, %v958
          %v999 = vpack.c.b16 %v963, %v959
          %v1000 = vpack.c.b16 %v964, %v960
          %v1001 = vpack.c.b16 %v965, %v961
          %v1002 = vpack.c.b16 %v970, %v966
          %v1003 = vpack.c.b16 %v971, %v967
          %v1004 = vpack.c.b16 %v972, %v968
          %v1005 = vpack.c.b16 %v973, %v969
          %1038 = vmatprep.subr.bf16.mxu0 %v975
          %1039 = vmatpush1.bf16.msra.mxu0 %v974
          %1040 = vmatprep.subr.bf16.mxu0 %v979
          %1041 = vmatpush1.bf16.msra.mxu0 %v978
          %1042 = vmatprep.subr.bf16.mxu0 %v983
          %1043 = vmatpush1.bf16.msra.mxu0 %v982
          %1044 = vmatprep.subr.bf16.mxu0 %v987
          %1045 = vmatpush1.bf16.msra.mxu0 %v986
          %1046 = vmatprep.subr.bf16.mxu0 %v991
          %1047 = vmatpush1.bf16.msra.mxu0 %v990
          %1048 = vmatprep.subr.bf16.mxu0 %v995
          %1049 = vmatpush1.bf16.msra.mxu0 %v994
          %1050 = vmatprep.subr.bf16.mxu0 %v999
          %1051 = vmatpush1.bf16.msra.mxu0 %v998
          %1052 = vmatprep.subr.bf16.mxu0 %v1003
          %1053 = vmatpush1.bf16.msra.mxu0 %v1002
          %1054 = vmatprep.subr.bf16.mxu0 0
          %1055 = vmatpush1.bf16.msra.mxu0 0
          %1056 = vmatprep.subr.bf16.mxu0 0
          %1057 = vmatpush1.bf16.msra.mxu0 0
          %1058 = vmatprep.subr.bf16.mxu0 0
          %1059 = vmatpush1.bf16.msra.mxu0 0
          %1060 = vmatprep.subr.bf16.mxu0 0
          %1061 = vmatpush1.bf16.msra.mxu0 0
          %1062 = vmatprep.subr.bf16.mxu0 0
          %1063 = vmatpush1.bf16.msra.mxu0 0
          %1064 = vmatprep.subr.bf16.mxu0 0
          %1065 = vmatpush1.bf16.msra.mxu0 0
          %1066 = vmatprep.subr.bf16.mxu0 0
          %1067 = vmatpush1.bf16.msra.mxu0 0
          %1068 = vmatprep.subr.bf16.mxu0 0
          %1069 = vmatpush1.bf16.msra.mxu0 0
          %1070 = vmatprep.mubr.bf16.mxu0 0
          %1071 = vmatmul.mubr.bf16.gmra.mrb[0].mxu0 %v823
          %v1072 = vpop.f32.mrb[0].mxu0
          %v1073 = vadd.f32 %v861, %v1072
          %v1074 = vpop.f32.mrb[0].mxu0
          %v1075 = vadd.f32 %v865, %v1074
          %v1076 = vpop.f32.mrb[0].mxu0
          %v1077 = vpop.f32.mrb[0].mxu0
          %1078 = vdwg.mxu0
          %1079 = vmatprep.subr.bf16.mxu0 %v977
          %1080 = vmatpush1.bf16.msra.mxu0 %v976
          %1081 = vmatprep.subr.bf16.mxu0 %v981
          %1082 = vmatpush1.bf16.msra.mxu0 %v980
          %1083 = vmatprep.subr.bf16.mxu0 %v985
          %1084 = vmatpush1.bf16.msra.mxu0 %v984
          %1085 = vmatprep.subr.bf16.mxu0 %v989
          %1086 = vmatpush1.bf16.msra.mxu0 %v988
          %1087 = vmatprep.subr.bf16.mxu0 %v993
          %1088 = vmatpush1.bf16.msra.mxu0 %v992
          %1089 = vmatprep.subr.bf16.mxu0 %v997
          %1090 = vmatpush1.bf16.msra.mxu0 %v996
          %1091 = vmatprep.subr.bf16.mxu0 %v1001
          %1092 = vmatpush1.bf16.msra.mxu0 %v1000
          %1093 = vmatprep.subr.bf16.mxu0 %v1005
          %1094 = vmatpush1.bf16.msra.mxu0 %v1004
          %1095 = vmatprep.subr.bf16.mxu0 0
          %1096 = vmatpush1.bf16.msra.mxu0 0
          %1097 = vmatprep.subr.bf16.mxu0 0
          %1098 = vmatpush1.bf16.msra.mxu0 0
          %1099 = vmatprep.subr.bf16.mxu0 0
          %1100 = vmatpush1.bf16.msra.mxu0 0
          %1101 = vmatprep.subr.bf16.mxu0 0
          %1102 = vmatpush1.bf16.msra.mxu0 0
          %1103 = vmatprep.subr.bf16.mxu0 0
          %1104 = vmatpush1.bf16.msra.mxu0 0
          %1105 = vmatprep.subr.bf16.mxu0 0
          %1106 = vmatpush1.bf16.msra.mxu0 0
          %1107 = vmatprep.subr.bf16.mxu0 0
          %1108 = vmatpush1.bf16.msra.mxu0 0
          %1109 = vmatprep.subr.bf16.mxu0 0
          %1110 = vmatpush1.bf16.msra.mxu0 0
          %1111 = vmatprep.mubr.bf16.mxu0 0
          %1112 = vmatmul.mubr.bf16.gmra.mrb[0].mxu0 %v823
          %v1113 = vpop.f32.mrb[0].mxu0
          %v1114 = vadd.f32 %v869, %v1113
          %v1115 = vpop.f32.mrb[0].mxu0
          %v1116 = vadd.f32 %v873, %v1115
          %v1117 = vpop.f32.mrb[0].mxu0
          %v1118 = vpop.f32.mrb[0].mxu0
          %1119 = vdwg.mxu0
          %1120 = vst [vmem:[%s407] sm:$0xff] %v1073
          %1121 = vst [vmem:[%s407 + $0x8] sm:$0xff] %v1075
          %1122 = vst [vmem:[%s407 + $0x10] sm:$0xff] %v1114
          %1123 = vst [vmem:[%s407 + $0x18] sm:$0xff] %v1116
        $region68: #{gaussian_denoise.1} parent=43 // pred_fallthru
          _
        %s1124 = smul.u32 %s28, %s27
        %s1125 = smul.u32 4, %s1124
        %p1126 = scmp.lt.s32.totalorder %s1125, 7
        %s1127 = scalar_select %p1126, %s1125, 7
        %s1128 = smul.addr %s1127, 8
        %s1129 = scalar_lea.vmem %s6, %s1128
        // Predicated region
        $region69: #{gaussian_denoise.1} parent=43 // pred_check
          %p1130 = pneg %p215
        $region70: #{gaussian_denoise.1} parent=43 // pred_check_branch
          %1132 = sbr.rel (%p1130) target = $region72
        $region71: #{gaussian_denoise.1} parent=43 // pred_region
          %s1133 = smul.u32 %s28, %s27
          %s1134 = smul.u32 4, %s1133
        $region72: #{gaussian_denoise.1} parent=43 // pred_fallthru
          _
      $region44: #{gaussian_denoise.1} parent=5 // pred_fallthru
        _
      %p1135 = scmp.le.s32.totalorder 2, %s18
      // Predicated region
      $region73: #{gaussian_denoise.1} parent=5 // pred_check
        %p1136 = pneg %p1135
      $region74: #{gaussian_denoise.1} parent=5 // pred_check_branch
        %1138 = sbr.rel (%p1136) target = $region76
      $region75: #{gaussian_denoise.1} parent=5 // pred_region
        %s1139 = ssub.s32 %s18, 2
        // Predicated region
        $region77: #{gaussian_denoise.1} parent=75 // pred_check
          %p1140 = pneg %p221
        $region78: #{gaussian_denoise.1} parent=75 // pred_check_branch
          %1142 = sbr.rel (%p1140) target = $region80
        $region79: #{gaussian_denoise.1} parent=75 // pred_region
          %s1143 = smul.u32 %s30, %s29
          %s1144 = smul.u32 4, %s1143
          %p1145 = scmp.lt.s32.totalorder %s1144, 7
          %s1146 = scalar_select %p1145, %s1144, 7
          %s1147 = smul.addr %s1146, 8
          %s1148 = scalar_lea.vmem %s6, %s1147
        $region80: #{gaussian_denoise.1} parent=75 // pred_fallthru
          _
      $region76: #{gaussian_denoise.1} parent=5 // pred_fallthru
        _
    $region6: #{gaussian_denoise.1} parent=1 // loop_footer
      %s22 = sadd.s32 1, %s18
    $region7: #{gaussian_denoise.1} parent=1 // loop_footer_branch
      %17 = sbr.rel target = $region3
    $region8: #{gaussian_denoise.1} parent=1 // loop_exit
      _
    %1149 = vsyncpa [#allocation5], 1
    %s1150 = scalar_lea.sflag [#allocation5], 1
    %1151 = vsyncpa %s1150, 1
    %1152 = vsyncpa [#allocation7], 1
    %s1153 = scalar_lea.sflag [#allocation7], 1
    %1154 = vsyncpa %s1153, 1

</llo_original>
